<compile_context>
chip_gen: v5e
topology: v5e:2x2
jax: 0.10.0
libtpu: 0.0.40
codegen_flags: <defaults>
</compile_context>

<pallas_src>
import functools
import math

import jax
import jax.numpy as jnp
from jax import lax
from jax.experimental import pallas as pl
from jax.experimental.pallas import tpu as pltpu

LANE = 128
# dot_general contracting the LAST axis of both operands: W[out,in] x X[b,in] -> [out,b]
_TRANS_B = (((1,), (1,)), ((), ()))


def _round_up(n: int, m: int) -> int:
    return ((n + m - 1) // m) * m


def _bc_kernel(x_ref, w1_ref, b1_ref, w2_ref, b2_ref, w3_ref, b3_ref, ot_ref, *,
               compute_dtype):
    # x_ref: [tile, state_dim] (natural layout, original dtype)
    # w_refs: [out, in] in compute_dtype; b_refs: [out, 1] f32
    # ot_ref: [action_dim, tile] f32 (lane-dense, batch on lanes)
    x = x_ref[...].astype(compute_dtype)                               # [tile, S]
    # h1^T = W1 @ x^T  -> [hidden, tile]; batch stays on the 128-lane axis.
    h1 = lax.dot_general(w1_ref[...], x, _TRANS_B,
                         preferred_element_type=jnp.float32) + b1_ref[...]
    h1 = jnp.maximum(h1, 0.0)                                          # f32 [H, tile]
    h2 = jnp.dot(w2_ref[...], h1.astype(compute_dtype),
                 preferred_element_type=jnp.float32) + b2_ref[...]
    h2 = jnp.maximum(h2, 0.0)                                          # f32 [H, tile]
    out = jnp.dot(w3_ref[...], h2.astype(compute_dtype),
                  preferred_element_type=jnp.float32) + b3_ref[...]
    ot_ref[...] = out.astype(ot_ref.dtype)                             # [A, tile]


def _forward_t(x, w1, b1, w2, b2, w3, b3, *, tile_b, compute_dtype, min_grid_steps):
    """Core pallas_call.  Returns the kernel-native [action_dim, B] f32 layout."""
    batch, state_dim = x.shape
    hidden = w1.shape[0]
    action_dim = w3.shape[0]

    # Batch tile on the lane axis: multiple of 128, big by default (8192) to
    # amortize the ~0.35 us per-grid-step overhead, but clamped so the parallel
    # grid has >= min_grid_steps steps when the batch is large enough (v7x megacore).
    b128 = _round_up(batch, LANE)
    tile = min(_round_up(max(tile_b, LANE), LANE), b128)
    if min_grid_steps > 1 and b128 >= min_grid_steps * LANE:
        tile = min(tile, _round_up(pl.cdiv(b128, min_grid_steps), LANE))
    grid = (pl.cdiv(batch, tile),)

    w1c, w2c, w3c = (w.astype(compute_dtype) for w in (w1, w2, w3))
    b1c, b2c, b3c = (b.astype(jnp.float32) for b in (b1, b2, b3))

    def resident(i):  # constant index_map -> DMA'd once, stays VMEM-resident
        return (0, 0)

    witem = jnp.dtype(compute_dtype).itemsize
    flops = 2 * b128 * (state_dim * hidden + hidden * hidden + hidden * action_dim)
    bytes_accessed = (x.size * x.dtype.itemsize                       # x stream
                      + action_dim * batch * 4                        # output stream
                      + (w1c.size + w2c.size + w3c.size) * witem      # resident weights
                      + (b1c.size + b2c.size + b3c.size) * 4)         # resident biases

    kernel = functools.partial(_bc_kernel, compute_dtype=compute_dtype)
    out_t = pl.pallas_call(
        kernel,
        out_shape=jax.ShapeDtypeStruct((action_dim, batch), jnp.float32),
        grid=grid,
        in_specs=[
            pl.BlockSpec((tile, state_dim), lambda i: (i, 0)),        # x batch tile
            pl.BlockSpec((hidden, state_dim), resident),              # W1
            pl.BlockSpec((hidden, 1), resident),                      # b1
            pl.BlockSpec((hidden, hidden), resident),                 # W2
            pl.BlockSpec((hidden, 1), resident),                      # b2
            pl.BlockSpec((action_dim, hidden), resident),             # W3
            pl.BlockSpec((action_dim, 1), resident),                  # b3
        ],
        out_specs=pl.BlockSpec((action_dim, tile), lambda i: (0, i)),
        compiler_params=pltpu.CompilerParams(
            dimension_semantics=("parallel",)),                       # megacore split on v7x
        cost_estimate=pl.CostEstimate(
            flops=flops, transcendentals=0, bytes_accessed=bytes_accessed),
    )(x, w1c, b1c, w2c, b2c, w3c, b3c)
    return out_t


@functools.partial(jax.jit, static_argnames=("tile_b", "compute_dtype", "min_grid_steps"))
def behavior_cloning_forward_t(x, w1, b1, w2, b2, w3, b3, *,
                               tile_b: int = 8192,
                               compute_dtype=jnp.bfloat16,
                               min_grid_steps: int = 2):
    """Native lane-dense output [action_dim, B] f32 (no extra output-transpose pass)."""
    return _forward_t(x, w1, b1, w2, b2, w3, b3, tile_b=tile_b,
                      compute_dtype=compute_dtype, min_grid_steps=min_grid_steps)


@functools.partial(jax.jit, static_argnames=("tile_b", "compute_dtype", "min_grid_steps"))
def behavior_cloning_forward(x, w1, b1, w2, b2, w3, b3, *,
                             tile_b: int = 8192,
                             compute_dtype=jnp.bfloat16,
                             min_grid_steps: int = 2):
    """PyTorch-semantics output [B, action_dim] f32 (one transpose on top of the kernel)."""
    out_t = _forward_t(x, w1, b1, w2, b2, w3, b3, tile_b=tile_b,
                       compute_dtype=compute_dtype, min_grid_steps=min_grid_steps)
    return jnp.transpose(out_t)


def init_params(key, state_dim, hidden_size, action_dim):
    """PyTorch-layout params: W [out, in], b [out, 1]; uniform(+-1/sqrt(fan_in)) like nn.Linear."""
    ks = jax.random.split(key, 6)

    def lin(kw, kb, fan_in, fan_out):
        bound = 1.0 / math.sqrt(fan_in)
        w = jax.random.uniform(kw, (fan_out, fan_in), jnp.float32, -bound, bound)
        b = jax.random.uniform(kb, (fan_out, 1), jnp.float32, -bound, bound)
        return w, b

    w1, b1 = lin(ks[0], ks[1], state_dim, hidden_size)
    w2, b2 = lin(ks[2], ks[3], hidden_size, hidden_size)
    w3, b3 = lin(ks[4], ks[5], hidden_size, action_dim)
    return w1, b1, w2, b2, w3, b3


def reference_forward(x, w1, b1, w2, b2, w3, b3, compute_dtype=jnp.float32):
    """Pure-JAX reference with PyTorch semantics; quantizes x/W/h like the kernel."""
    q = lambda a: a.astype(compute_dtype).astype(jnp.float32)
    h1 = jnp.maximum(q(x) @ q(w1).T + b1.T, 0.0)
    h2 = jnp.maximum(q(h1) @ q(w2).T + b2.T, 0.0)
    return q(h2) @ q(w3).T + b3.T


if __name__ == "__main__":
    state_dim, action_dim, hidden_size = 16, 8, 32

    key = jax.random.PRNGKey(0)
    kx, kx2, kx3, kp = jax.random.split(key, 4)
    params = init_params(kp, state_dim, hidden_size, action_dim)

    # Tiny batch (single partially-filled 128-lane tile), exact f32 compute path.
    x = jax.random.normal(kx, (8, state_dim), jnp.float32)
    out = jax.block_until_ready(
        behavior_cloning_forward(x, *params, compute_dtype=jnp.float32))
    ref = reference_forward(x, *params, compute_dtype=jnp.float32)
    assert out.shape == (8, action_dim)
    assert jnp.all(jnp.isfinite(out)), "non-finite values in f32 output"
    assert jnp.allclose(out, ref, atol=1e-5, rtol=1e-5), "f32 mismatch vs reference"

    # Non-multiple-of-128 batch: multi-step grid + edge-block masking, bf16 MXU path.
    x2 = jax.random.normal(kx2, (300, state_dim), jnp.float32)
    out2 = jax.block_until_ready(
        behavior_cloning_forward(x2, *params, tile_b=128, compute_dtype=jnp.bfloat16))
    ref2 = reference_forward(x2, *params, compute_dtype=jnp.bfloat16)
    assert out2.shape == (300, action_dim)
    assert jnp.all(jnp.isfinite(out2)), "non-finite values leaked from padded lanes"
    assert jnp.allclose(out2, ref2, atol=2e-3, rtol=2e-3), "bf16 mismatch vs reference"

    # Odd batch, single partial block; native-layout entry point (no output transpose).
    x3 = jax.random.normal(kx3, (37, state_dim), jnp.float32)
    out3_t = jax.block_until_ready(
        behavior_cloning_forward_t(x3, *params, compute_dtype=jnp.float32))
    ref3 = reference_forward(x3, *params, compute_dtype=jnp.float32)
    assert out3_t.shape == (action_dim, 37)
    assert jnp.all(jnp.isfinite(out3_t)), "non-finite values leaked from padded lanes"
    assert jnp.allclose(out3_t.T, ref3, atol=1e-5, rtol=1e-5), "odd-batch mismatch vs reference"

    print("KERNEL_OK")
</pallas_src>

<mosaic_0001>
module attributes {stable_mosaic.version = 11 : i64} {
  func.func @_bc_kernel(%arg0: i32, %arg1: memref<128x16xf32, #tpu.memory_space<vmem>>, %arg2: memref<32x16xf32, #tpu.memory_space<vmem>>, %arg3: memref<32x1xf32, #tpu.memory_space<vmem>>, %arg4: memref<32x32xf32, #tpu.memory_space<vmem>>, %arg5: memref<32x1xf32, #tpu.memory_space<vmem>>, %arg6: memref<8x32xf32, #tpu.memory_space<vmem>>, %arg7: memref<8x1xf32, #tpu.memory_space<vmem>>, %arg8: memref<8x128xf32, #tpu.memory_space<vmem>>) attributes {dimension_semantics = [#tpu.dimension_semantics<parallel>], iteration_bounds = array<i64: 1>, scalar_prefetch = 0 : i64, scratch_operands = 0 : i64, tpu.core_type = #tpu.core_type<tc>, window_params = [{transform_indices = @transform_0, window_bounds = array<i64: 128, 16>}, {pipeline_mode = #tpu.pipeline_mode<synchronous>, transform_indices = @transform_1, window_bounds = array<i64: 32, 16>}, {pipeline_mode = #tpu.pipeline_mode<synchronous>, transform_indices = @transform_2, window_bounds = array<i64: 32, 1>}, {pipeline_mode = #tpu.pipeline_mode<synchronous>, transform_indices = @transform_3, window_bounds = array<i64: 32, 32>}, {pipeline_mode = #tpu.pipeline_mode<synchronous>, transform_indices = @transform_4, window_bounds = array<i64: 32, 1>}, {pipeline_mode = #tpu.pipeline_mode<synchronous>, transform_indices = @transform_5, window_bounds = array<i64: 8, 32>}, {pipeline_mode = #tpu.pipeline_mode<synchronous>, transform_indices = @transform_6, window_bounds = array<i64: 8, 1>}, {transform_indices = @transform_7, window_bounds = array<i64: 8, 128>}]} {
    %c0 = arith.constant 0 : index
    %c0_0 = arith.constant 0 : index
    %0 = vector.load %arg1[%c0, %c0_0] : memref<128x16xf32, #tpu.memory_space<vmem>>, vector<128x16xf32>
    %c0_1 = arith.constant 0 : index
    %c0_2 = arith.constant 0 : index
    %1 = vector.load %arg2[%c0_1, %c0_2] : memref<32x16xf32, #tpu.memory_space<vmem>>, vector<32x16xf32>
    %cst = arith.constant dense<0.000000e+00> : vector<32x128xf32>
    %2 = tpu.matmul %1, %0, %cst {dimension_numbers = #tpu.dot_dimension_numbers<[1], [1], [0], [0], [0, 0, 1, 0], [], []>} : vector<32x16xf32>, vector<128x16xf32>, vector<32x128xf32> -> vector<32x128xf32>
    %c0_3 = arith.constant 0 : index
    %c0_4 = arith.constant 0 : index
    %3 = vector.load %arg3[%c0_3, %c0_4] : memref<32x1xf32, #tpu.memory_space<vmem>>, vector<32x1xf32>
    %4 = vector.broadcast %3 : vector<32x1xf32> to vector<32x128xf32>
    %5 = arith.addf %2, %4 : vector<32x128xf32>
    %cst_5 = arith.constant 0.000000e+00 : f32
    %6 = vector.broadcast %cst_5 : f32 to vector<32x128xf32>
    %7 = arith.maximumf %5, %6 : vector<32x128xf32>
    %c0_6 = arith.constant 0 : index
    %c0_7 = arith.constant 0 : index
    %8 = vector.load %arg4[%c0_6, %c0_7] : memref<32x32xf32, #tpu.memory_space<vmem>>, vector<32x32xf32>
    %cst_8 = arith.constant dense<0.000000e+00> : vector<32x128xf32>
    %9 = tpu.matmul %8, %7, %cst_8 {dimension_numbers = #tpu.dot_dimension_numbers<[1], [0], [0], [1], [0, 0, 1, 1], [], []>} : vector<32x32xf32>, vector<32x128xf32>, vector<32x128xf32> -> vector<32x128xf32>
    %c0_9 = arith.constant 0 : index
    %c0_10 = arith.constant 0 : index
    %10 = vector.load %arg5[%c0_9, %c0_10] : memref<32x1xf32, #tpu.memory_space<vmem>>, vector<32x1xf32>
    %11 = vector.broadcast %10 : vector<32x1xf32> to vector<32x128xf32>
    %12 = arith.addf %9, %11 : vector<32x128xf32>
    %cst_11 = arith.constant 0.000000e+00 : f32
    %13 = vector.broadcast %cst_11 : f32 to vector<32x128xf32>
    %14 = arith.maximumf %12, %13 : vector<32x128xf32>
    %c0_12 = arith.constant 0 : index
    %c0_13 = arith.constant 0 : index
    %15 = vector.load %arg6[%c0_12, %c0_13] : memref<8x32xf32, #tpu.memory_space<vmem>>, vector<8x32xf32>
    %cst_14 = arith.constant dense<0.000000e+00> : vector<8x128xf32>
    %16 = tpu.matmul %15, %14, %cst_14 {dimension_numbers = #tpu.dot_dimension_numbers<[1], [0], [0], [1], [0, 0, 1, 1], [], []>} : vector<8x32xf32>, vector<32x128xf32>, vector<8x128xf32> -> vector<8x128xf32>
    %c0_15 = arith.constant 0 : index
    %c0_16 = arith.constant 0 : index
    %17 = vector.load %arg7[%c0_15, %c0_16] : memref<8x1xf32, #tpu.memory_space<vmem>>, vector<8x1xf32>
    %18 = vector.broadcast %17 : vector<8x1xf32> to vector<8x128xf32>
    %19 = arith.addf %16, %18 : vector<8x128xf32>
    %c0_17 = arith.constant 0 : index
    %c0_18 = arith.constant 0 : index
    %20 = vector.load %arg8[%c0_17, %c0_18] : memref<8x128xf32, #tpu.memory_space<vmem>>, vector<8x128xf32>
    tpu.vector_store %arg8[%c0_17, %c0_18], %19 {strides = array<i32>} : memref<8x128xf32, #tpu.memory_space<vmem>>, vector<8x128xf32>,
    return
  }
  func.func @transform_0(%arg0: i32) -> (i32, i32) {
    %c0_i32 = arith.constant 0 : i32
    %c0_i32_0 = arith.constant 0 : i32
    return %arg0, %c0_i32 : i32, i32
  }
  func.func @transform_1(%arg0: i32) -> (i32, i32) {
    %c0_i32 = arith.constant 0 : i32
    %c0_i32_0 = arith.constant 0 : i32
    %c0_i32_1 = arith.constant 0 : i32
    return %c0_i32, %c0_i32_0 : i32, i32
  }
  func.func @transform_2(%arg0: i32) -> (i32, i32) {
    %c0_i32 = arith.constant 0 : i32
    %c0_i32_0 = arith.constant 0 : i32
    %c0_i32_1 = arith.constant 0 : i32
    return %c0_i32, %c0_i32_0 : i32, i32
  }
  func.func @transform_3(%arg0: i32) -> (i32, i32) {
    %c0_i32 = arith.constant 0 : i32
    %c0_i32_0 = arith.constant 0 : i32
    %c0_i32_1 = arith.constant 0 : i32
    return %c0_i32, %c0_i32_0 : i32, i32
  }
  func.func @transform_4(%arg0: i32) -> (i32, i32) {
    %c0_i32 = arith.constant 0 : i32
    %c0_i32_0 = arith.constant 0 : i32
    %c0_i32_1 = arith.constant 0 : i32
    return %c0_i32, %c0_i32_0 : i32, i32
  }
  func.func @transform_5(%arg0: i32) -> (i32, i32) {
    %c0_i32 = arith.constant 0 : i32
    %c0_i32_0 = arith.constant 0 : i32
    %c0_i32_1 = arith.constant 0 : i32
    return %c0_i32, %c0_i32_0 : i32, i32
  }
  func.func @transform_6(%arg0: i32) -> (i32, i32) {
    %c0_i32 = arith.constant 0 : i32
    %c0_i32_0 = arith.constant 0 : i32
    %c0_i32_1 = arith.constant 0 : i32
    return %c0_i32, %c0_i32_0 : i32, i32
  }
  func.func @transform_7(%arg0: i32) -> (i32, i32) {
    %c0_i32 = arith.constant 0 : i32
    %c0_i32_0 = arith.constant 0 : i32
    return %c0_i32, %arg0 : i32, i32
  }
}

</mosaic_0001>

<llo_original>
// kernel: behavior_cloning_forward.1
$region0: #{behavior_cloning_forward.1}
  #allocation0 [shape = 'u32[]', space=smem, size = 0x4, offset = 0x4, fixed_abs, tag = 'smem constant byte address 0x4 - core index']
  #allocation1 [shape = 'u32[72,128]{1,0:T(1,128)}', space=vmem, size = 0x9000, scoped, tag = 'internal scratch']
  %s0 = inlined_call_operand.vmem [shape: f32[8,16], index: 0, kind: input, shape index: {}]
  %s1 = inlined_call_operand.vmem [shape: f32[32,16], index: 1, kind: input, shape index: {}]
  %s2 = inlined_call_operand.vmem [shape: f32[32,1], index: 2, kind: input, shape index: {}]
  %s3 = inlined_call_operand.vmem [shape: f32[32,32], index: 3, kind: input, shape index: {}]
  %s4 = inlined_call_operand.vmem [shape: f32[32,1], index: 4, kind: input, shape index: {}]
  %s5 = inlined_call_operand.vmem [shape: f32[8,32], index: 5, kind: input, shape index: {}]
  %s6 = inlined_call_operand.vmem [shape: f32[8,1], index: 6, kind: input, shape index: {}]
  %s7 = inlined_call_operand.vmem [shape: f32[8,8], index: 7, kind: output, shape index: {}]
  %s8 = sld [smem:[#allocation0]]
  $region38: #{behavior_cloning_forward.1} parent=0
    _
  %s10 = ssub.s32 1, %s8
  %s11 = scalar_select 0, %s10, %s8
  // Predicated region
  $region2: #{behavior_cloning_forward.1} parent=0 // pred_check
    _
  $region3: #{behavior_cloning_forward.1} parent=0 // pred_check_branch
    %13 = sbr.rel (0) target = $region5
  $region4: #{behavior_cloning_forward.1} parent=0 // pred_region
    _
  $region5: #{behavior_cloning_forward.1} parent=0 // pred_fallthru
    _
  // Predicated region
  $region6: #{behavior_cloning_forward.1} parent=0 // pred_check
    _
  $region7: #{behavior_cloning_forward.1} parent=0 // pred_check_branch
    %15 = sbr.rel (0) target = $region9
  $region8: #{behavior_cloning_forward.1} parent=0 // pred_region
    _
  $region9: #{behavior_cloning_forward.1} parent=0 // pred_fallthru
    _
  // Predicated region
  $region10: #{behavior_cloning_forward.1} parent=0 // pred_check
    _
  $region11: #{behavior_cloning_forward.1} parent=0 // pred_check_branch
    %17 = sbr.rel (0) target = $region13
  $region12: #{behavior_cloning_forward.1} parent=0 // pred_region
    _
  $region13: #{behavior_cloning_forward.1} parent=0 // pred_fallthru
    _
  // Predicated region
  $region14: #{behavior_cloning_forward.1} parent=0 // pred_check
    _
  $region15: #{behavior_cloning_forward.1} parent=0 // pred_check_branch
    %19 = sbr.rel (0) target = $region17
  $region16: #{behavior_cloning_forward.1} parent=0 // pred_region
    _
  $region17: #{behavior_cloning_forward.1} parent=0 // pred_fallthru
    _
  // Predicated region
  $region18: #{behavior_cloning_forward.1} parent=0 // pred_check
    _
  $region19: #{behavior_cloning_forward.1} parent=0 // pred_check_branch
    %21 = sbr.rel (0) target = $region21
  $region20: #{behavior_cloning_forward.1} parent=0 // pred_region
    _
  $region21: #{behavior_cloning_forward.1} parent=0 // pred_fallthru
    _
  // Predicated region
  $region22: #{behavior_cloning_forward.1} parent=0 // pred_check
    _
  $region23: #{behavior_cloning_forward.1} parent=0 // pred_check_branch
    %23 = sbr.rel (0) target = $region25
  $region24: #{behavior_cloning_forward.1} parent=0 // pred_region
    _
  $region25: #{behavior_cloning_forward.1} parent=0 // pred_fallthru
    _
  // Predicated region
  $region26: #{behavior_cloning_forward.1} parent=0 // pred_check
    _
  $region27: #{behavior_cloning_forward.1} parent=0 // pred_check_branch
    %25 = sbr.rel (0) target = $region29
  $region28: #{behavior_cloning_forward.1} parent=0 // pred_region
    _
  $region29: #{behavior_cloning_forward.1} parent=0 // pred_fallthru
    _
  %v26 = vld [vmem:[%s0] sm:$0xff]
  %v27 = vld [vmem:[%s0 + $0x8] sm:$0xff]
  %v28 = vld [vmem:[%s0 + $0x10] sm:$0xff]
  %v29 = vld [vmem:[%s0 + $0x18] sm:$0xff]
  %v30 = vld [vmem:[%s0 + $0x20] sm:$0xff]
  %v31 = vld [vmem:[%s0 + $0x28] sm:$0xff]
  %v32 = vld [vmem:[%s0 + $0x30] sm:$0xff]
  %v33 = vld [vmem:[%s0 + $0x38] sm:$0xff]
  %v34 = vld [vmem:[%s0 + $0x40] sm:$0xff]
  %v35 = vld [vmem:[%s0 + $0x48] sm:$0xff]
  %v36 = vld [vmem:[%s0 + $0x50] sm:$0xff]
  %v37 = vld [vmem:[%s0 + $0x58] sm:$0xff]
  %v38 = vld [vmem:[%s0 + $0x60] sm:$0xff]
  %v39 = vld [vmem:[%s0 + $0x68] sm:$0xff]
  %v40 = vld [vmem:[%s0 + $0x70] sm:$0xff]
  %v41 = vld [vmem:[%s0 + $0x78] sm:$0xff]
  %v42 = vld [vmem:[%s1] sm:$0xff]
  %v43 = vld [vmem:[%s1 + $0x8] sm:$0xff]
  %v44 = vld [vmem:[%s1 + $0x10] sm:$0xff]
  %v45 = vld [vmem:[%s1 + $0x18] sm:$0xff]
  %v46 = vld [vmem:[%s2] sm:$0xff]
  %v47 = vld [vmem:[%s2 + $0x8] sm:$0xff]
  %v48 = vld [vmem:[%s2 + $0x10] sm:$0xff]
  %v49 = vld [vmem:[%s2 + $0x18] sm:$0xff]
  %51 = vset.pattern.permute.xlu0 0
  %52 = vperm.xlu0 %51, %v46
  %v53 = vpop.permute.xlu0 %52
  %56 = vset.pattern.permute.xlu0 0
  %57 = vperm.xlu0 %56, %v47
  %v58 = vpop.permute.xlu0 %57
  %61 = vset.pattern.permute.xlu0 0
  %62 = vperm.xlu0 %61, %v48
  %v63 = vpop.permute.xlu0 %62
  %66 = vset.pattern.permute.xlu0 0
  %67 = vperm.xlu0 %66, %v49
  %v68 = vpop.permute.xlu0 %67
  %vm70 = vcmask 130048
  %v72 = vsel %vm70, %v42, 0
  %v75 = vsel %vm70, %v43, 0
  %v78 = vsel %vm70, %v44, 0
  %v81 = vsel %vm70, %v45, 0
  %v84 = vsel %vm70, %v26, 0
  %v87 = vsel %vm70, %v27, 0
  %v90 = vsel %vm70, %v28, 0
  %v93 = vsel %vm70, %v29, 0
  %v96 = vsel %vm70, %v30, 0
  %v99 = vsel %vm70, %v31, 0
  %v102 = vsel %vm70, %v32, 0
  %v105 = vsel %vm70, %v33, 0
  %v108 = vsel %vm70, %v34, 0
  %v111 = vsel %vm70, %v35, 0
  %v114 = vsel %vm70, %v36, 0
  %v117 = vsel %vm70, %v37, 0
  %v120 = vsel %vm70, %v38, 0
  %v123 = vsel %vm70, %v39, 0
  %v126 = vsel %vm70, %v40, 0
  %v129 = vsel %vm70, %v41, 0
  %131 = vmatpush.xpose.msra.mxu0 %v129
  %132 = vmatpush.xpose.msra.mxu0 %v126
  %133 = vmatpush.xpose.msra.mxu0 %v123
  %134 = vmatpush.xpose.msra.mxu0 %v120
  %135 = vmatpush.xpose.msra.mxu0 %v117
  %136 = vmatpush.xpose.msra.mxu0 %v114
  %137 = vmatpush.xpose.msra.mxu0 %v111
  %138 = vmatpush.xpose.msra.mxu0 %v108
  %139 = vmatpush.xpose.msra.mxu0 %v105
  %140 = vmatpush.xpose.msra.mxu0 %v102
  %141 = vmatpush.xpose.msra.mxu0 %v99
  %142 = vmatpush.xpose.msra.mxu0 %v96
  %143 = vmatpush.xpose.msra.mxu0 %v93
  %144 = vmatpush.xpose.msra.mxu0 %v90
  %145 = vmatpush.xpose.msra.mxu0 %v87
  %146 = vmatpush.xpose.msra.mxu0 %v84
  %147 = vmatmul.f32.gmra.mxu0 %v72
  %v148 = vpop.f32.mrf.mxu0
  %v149 = vadd.f32 %v53, %v148
  %150 = vmatmul.f32.gmra.mxu0 %v75
  %v151 = vpop.f32.mrf.mxu0
  %v152 = vadd.f32 %v58, %v151
  %153 = vmatmul.f32.gmra.mxu0 %v78
  %v154 = vpop.f32.mrf.mxu0
  %v155 = vadd.f32 %v63, %v154
  %156 = vmatmul.f32.gmra.mxu0 %v81
  %v157 = vpop.f32.mrf.mxu0
  %v158 = vadd.f32 %v68, %v157
  %159 = vdwg.mxu0
  %v160 = vmax.f32 %v149, 0.0
  %v161 = vmax.f32 %v152, 0.0
  %v162 = vmax.f32 %v155, 0.0
  %v163 = vmax.f32 %v158, 0.0
  %v164 = vld [vmem:[%s3] sm:$0xff]
  %v165 = vld [vmem:[%s3 + $0x8] sm:$0xff]
  %v166 = vld [vmem:[%s3 + $0x10] sm:$0xff]
  %v167 = vld [vmem:[%s3 + $0x18] sm:$0xff]
  %v168 = vld [vmem:[%s4] sm:$0xff]
  %v169 = vld [vmem:[%s4 + $0x8] sm:$0xff]
  %v170 = vld [vmem:[%s4 + $0x10] sm:$0xff]
  %v171 = vld [vmem:[%s4 + $0x18] sm:$0xff]
  %173 = vset.pattern.permute.xlu0 0
  %174 = vperm.xlu0 %173, %v168
  %v175 = vpop.permute.xlu0 %174
  %178 = vset.pattern.permute.xlu0 0
  %179 = vperm.xlu0 %178, %v169
  %v180 = vpop.permute.xlu0 %179
  %183 = vset.pattern.permute.xlu0 0
  %184 = vperm.xlu0 %183, %v170
  %v185 = vpop.permute.xlu0 %184
  %188 = vset.pattern.permute.xlu0 0
  %189 = vperm.xlu0 %188, %v171
  %v190 = vpop.permute.xlu0 %189
  %vm192 = vcmask 261120
  %v194 = vsel %vm192, %v164, 0
  %v197 = vsel %vm192, %v165, 0
  %v200 = vsel %vm192, %v166, 0
  %v203 = vsel %vm192, %v167, 0
  %205 = vmatpush.msra.mxu0 0.0
  %206 = vmatpush.msra.mxu0 0.0
  %207 = vmatpush.msra.mxu0 0.0
  %208 = vmatpush.msra.mxu0 0.0
  %209 = vmatpush.msra.mxu0 0.0
  %210 = vmatpush.msra.mxu0 0.0
  %211 = vmatpush.msra.mxu0 0.0
  %212 = vmatpush.msra.mxu0 0.0
  %213 = vmatpush.msra.mxu0 0.0
  %214 = vmatpush.msra.mxu0 0.0
  %215 = vmatpush.msra.mxu0 0.0
  %216 = vmatpush.msra.mxu0 0.0
  %217 = vmatpush.msra.mxu0 %v163
  %218 = vmatpush.msra.mxu0 %v162
  %219 = vmatpush.msra.mxu0 %v161
  %220 = vmatpush.msra.mxu0 %v160
  %221 = vmatmul.f32.gmra.mxu0 %v194
  %v222 = vpop.f32.mrf.mxu0
  %v223 = vadd.f32 %v175, %v222
  %224 = vmatmul.f32.gmra.mxu0 %v197
  %v225 = vpop.f32.mrf.mxu0
  %v226 = vadd.f32 %v180, %v225
  %227 = vmatmul.f32.gmra.mxu0 %v200
  %v228 = vpop.f32.mrf.mxu0
  %v229 = vadd.f32 %v185, %v228
  %230 = vmatmul.f32.gmra.mxu0 %v203
  %v231 = vpop.f32.mrf.mxu0
  %v232 = vadd.f32 %v190, %v231
  %233 = vdwg.mxu0
  %v234 = vmax.f32 %v223, 0.0
  %v235 = vmax.f32 %v226, 0.0
  %v236 = vmax.f32 %v229, 0.0
  %v237 = vmax.f32 %v232, 0.0
  %v238 = vld [vmem:[%s5] sm:$0xff]
  %v239 = vld [vmem:[%s6] sm:$0xff]
  %241 = vset.pattern.permute.xlu0 0
  %242 = vperm.xlu0 %241, %v239
  %v243 = vpop.permute.xlu0 %242
  %v246 = vsel %vm192, %v238, 0
  %248 = vmatpush.msra.mxu0 0.0
  %249 = vmatpush.msra.mxu0 0.0
  %250 = vmatpush.msra.mxu0 0.0
  %251 = vmatpush.msra.mxu0 0.0
  %252 = vmatpush.msra.mxu0 0.0
  %253 = vmatpush.msra.mxu0 0.0
  %254 = vmatpush.msra.mxu0 0.0
  %255 = vmatpush.msra.mxu0 0.0
  %256 = vmatpush.msra.mxu0 0.0
  %257 = vmatpush.msra.mxu0 0.0
  %258 = vmatpush.msra.mxu0 0.0
  %259 = vmatpush.msra.mxu0 0.0
  %260 = vmatpush.msra.mxu0 %v237
  %261 = vmatpush.msra.mxu0 %v236
  %262 = vmatpush.msra.mxu0 %v235
  %263 = vmatpush.msra.mxu0 %v234
  %264 = vmatmul.f32.gmra.mxu0 %v246
  %v265 = vpop.f32.mrf.mxu0
  %v266 = vadd.f32 %v243, %v265
  %267 = vdwg.mxu0
  %268 = vst [vmem:[%s7] sm:$0xff] %v266
  // Predicated region
  $region30: #{behavior_cloning_forward.1} parent=0 // pred_check
    _
  $region31: #{behavior_cloning_forward.1} parent=0 // pred_check_branch
    %270 = sbr.rel (0) target = $region33
  $region32: #{behavior_cloning_forward.1} parent=0 // pred_region
    _
  $region33: #{behavior_cloning_forward.1} parent=0 // pred_fallthru
    _
  // Predicated region
  $region34: #{behavior_cloning_forward.1} parent=0 // pred_check
    _
  $region35: #{behavior_cloning_forward.1} parent=0 // pred_check_branch
    %272 = sbr.rel (0) target = $region37
  $region36: #{behavior_cloning_forward.1} parent=0 // pred_region
    _
  $region37: #{behavior_cloning_forward.1} parent=0 // pred_fallthru
    _

</llo_original>
